<compile_context>
chip_gen: v7x
topology: tpu7x:2x2x1
jax: 0.10.0
libtpu: 0.0.40
codegen_flags: <defaults>
</compile_context>

<pallas_src>
import functools
import math

import jax
import jax.numpy as jnp
from jax.experimental import pallas as pl
from jax.experimental.pallas import tpu as pltpu


def _round_up(x, m):
    return (x + m - 1) // m * m


def _contrast_tiles_kernel(v1_ref, v2_ref, rowp_ref, colp_ref, diag_ref, *,
                           scale, b_real, tm, tn, masked):
    i = pl.program_id(0)   # row-tile index
    j = pl.program_id(1)   # col-tile index

    a = v1_ref[...]        # (TM, Dp), native dtype (f32 / bf16)
    b = v2_ref[...]        # (TN, Dp)

    # logits block = scale * a @ b.T, contracting the shared feature axis so
    # the MXU never sees an explicit transpose; accumulate in f32.
    logits = jax.lax.dot_general(
        a, b, dimension_numbers=(((1,), (1,)), ((), ())),
        preferred_element_type=jnp.float32)
    logits = logits * jnp.float32(scale)

    if masked:
        # Push padded rows / columns far negative so they vanish from the LSEs.
        neg = jnp.float32(-1e30)
        col_ids = jax.lax.broadcasted_iota(jnp.int32, (1, tn), 1) + j * tn
        row_ids = jax.lax.broadcasted_iota(jnp.int32, (tm, 1), 0) + i * tm
        logits = (logits
                  + jnp.where(col_ids < b_real, 0.0, neg)
                  + jnp.where(row_ids < b_real, 0.0, neg))

    # Single exp pass per block (block-max normalized) feeds both reductions.
    c = jnp.max(logits)
    e = jnp.exp(logits - c)
    rowp_ref[0, :, :] = c + jnp.log(jnp.sum(e, axis=1, keepdims=True))  # (TM,1)
    colp_ref[0, :, :] = c + jnp.log(jnp.sum(e, axis=0, keepdims=True))  # (1,TN)

    # Diagonal of the scaled logits: only diagonal blocks (i == j) hold it; a
    # row-wise dot is O(TM*D) instead of O(TM*TN) iota masking.
    @pl.when(j == i)
    def _():
        d = jnp.sum(a.astype(jnp.float32) * b.astype(jnp.float32),
                    axis=1, keepdims=True)
        diag_ref[...] = jnp.float32(scale) * d


@functools.partial(jax.jit, static_argnames=("tau",))
def contrast_loss(vecs1, vecs2, tau):
    assert vecs1.shape == vecs2.shape and vecs1.ndim == 2
    B, D = vecs1.shape
    scale = math.exp(tau)

    # Lane / MXU friendly padding and tile choice.
    Dp = _round_up(D, 128)
    if B <= 256:
        tile = _round_up(B, 8)          # single tile, minimal batch padding
    elif B <= 2048:
        tile = 128
    else:
        tile = 256
    Bp = _round_up(B, tile)
    n_i = Bp // tile                    # row tiles
    n_j = Bp // tile                    # col tiles
    masked = (Bp != B)

    if Bp != B or Dp != D:
        v1p = jnp.pad(vecs1, ((0, Bp - B), (0, Dp - D)))
        v2p = jnp.pad(vecs2, ((0, Bp - B), (0, Dp - D)))
    else:
        v1p, v2p = vecs1, vecs2

    kernel = functools.partial(
        _contrast_tiles_kernel, scale=scale, b_real=B, tm=tile, tn=tile,
        masked=masked)

    itemsize = jnp.dtype(v1p.dtype).itemsize
    cost = pl.CostEstimate(
        flops=2 * Bp * Bp * Dp,
        transcendentals=Bp * Bp,
        bytes_accessed=(Bp * Dp + n_i * Bp * Dp) * itemsize
        + (2 * n_i * Bp + Bp) * 4)

    row_part, col_part, diag = pl.pallas_call(
        kernel,
        out_shape=(
            jax.ShapeDtypeStruct((n_j, Bp, 1), jnp.float32),   # row partial LSEs
            jax.ShapeDtypeStruct((n_i, 1, Bp), jnp.float32),   # col partial LSEs
            jax.ShapeDtypeStruct((Bp, 1), jnp.float32),        # scaled diagonal
        ),
        grid_spec=pltpu.PrefetchScalarGridSpec(
            num_scalar_prefetch=0,
            grid=(n_i, n_j),
            in_specs=[
                pl.BlockSpec((tile, Dp), lambda i, j: (i, 0)),   # v1 row panel
                pl.BlockSpec((tile, Dp), lambda i, j: (j, 0)),   # v2 col panel
            ],
            out_specs=[
                pl.BlockSpec((1, tile, 1), lambda i, j: (j, i, 0)),
                pl.BlockSpec((1, 1, tile), lambda i, j: (i, 0, j)),
                pl.BlockSpec((tile, 1), lambda i, j: (i, 0)),
            ],
        ),
        compiler_params=pltpu.CompilerParams(
            dimension_semantics=("parallel", "arbitrary"),
            vmem_limit_bytes=48 * 1024 * 1024),
        cost_estimate=cost,
    )(v1p, v2p)

    # Tiny plain-JAX epilogue: combine per-tile partial LSEs (exact two-level
    # logsumexp), drop padded rows/cols, take the two means.
    row_lse = jax.scipy.special.logsumexp(row_part[:, :B, 0], axis=0)   # (B,)
    col_lse = jax.scipy.special.logsumexp(col_part[:, 0, :B], axis=0)   # (B,)
    d = diag[:B, 0]
    return jnp.mean(row_lse - d) + jnp.mean(col_lse - d)


def contrast_loss_ref(vecs1, vecs2, tau):
    """Pure-JAX reference matching the PyTorch module."""
    logits = math.exp(tau) * (vecs1.astype(jnp.float32)
                              @ vecs2.astype(jnp.float32).T)

    def ce(lg):
        lse = jax.scipy.special.logsumexp(lg, axis=1)
        return jnp.mean(lse - jnp.diagonal(lg))

    return ce(logits) + ce(logits.T)


if __name__ == "__main__":
    tau = 0.07  # module hyperparameter (deterministic, set in-script)
    key = jax.random.PRNGKey(0)

    # (8, 32): original small case, single tile, no batch padding.
    # (13, 32): exercises the padded / masked path.
    # (384, 64): exercises the multi-tile grid (3x3) with diagonal blocks.
    for (B, D) in [(8, 32), (13, 32), (384, 64)]:
        key, k1, k2 = jax.random.split(key, 3)
        vecs1 = jax.random.normal(k1, (B, D), dtype=jnp.float32)
        vecs2 = jax.random.normal(k2, (B, D), dtype=jnp.float32)

        out = jax.block_until_ready(contrast_loss(vecs1, vecs2, tau=tau))
        ref = jax.block_until_ready(contrast_loss_ref(vecs1, vecs2, tau))
        assert jnp.allclose(out, ref, rtol=1e-5, atol=1e-4), (B, D, out, ref)

    print("KERNEL_OK")
</pallas_src>

<mosaic_0001>
module attributes {stable_mosaic.version = 11 : i64} {
  func.func @_contrast_tiles_kernel(%arg0: i32, %arg1: i32, %arg2: memref<8x128xf32, #tpu.memory_space<vmem>>, %arg3: memref<8x128xf32, #tpu.memory_space<vmem>>, %arg4: memref<1x8x1xf32, #tpu.memory_space<vmem>>, %arg5: memref<1x1x8xf32, #tpu.memory_space<vmem>>, %arg6: memref<8x1xf32, #tpu.memory_space<vmem>>) attributes {dimension_semantics = [#tpu.dimension_semantics<parallel>, #tpu.dimension_semantics<arbitrary>], iteration_bounds = array<i64: 1, 1>, scalar_prefetch = 0 : i64, scratch_operands = 0 : i64, tpu.core_type = #tpu.core_type<tc>, window_params = [{transform_indices = @transform_0, window_bounds = array<i64: 8, 128>}, {transform_indices = @transform_1, window_bounds = array<i64: 8, 128>}, {transform_indices = @transform_2, window_bounds = array<i64: 1, 8, 1>}, {transform_indices = @transform_3, window_bounds = array<i64: 1, 1, 8>}, {transform_indices = @transform_4, window_bounds = array<i64: 8, 1>}]} {
    %c0 = arith.constant 0 : index
    %c0_0 = arith.constant 0 : index
    %0 = vector.load %arg2[%c0, %c0_0] : memref<8x128xf32, #tpu.memory_space<vmem>>, vector<8x128xf32>
    %c0_1 = arith.constant 0 : index
    %c0_2 = arith.constant 0 : index
    %1 = vector.load %arg3[%c0_1, %c0_2] : memref<8x128xf32, #tpu.memory_space<vmem>>, vector<8x128xf32>
    %cst = arith.constant dense<0.000000e+00> : vector<8x8xf32>
    %2 = tpu.matmul %0, %1, %cst {dimension_numbers = #tpu.dot_dimension_numbers<[1], [1], [0], [0], [0, 0, 1, 0], [], []>} : vector<8x128xf32>, vector<8x128xf32>, vector<8x8xf32> -> vector<8x8xf32>
    %cst_3 = arith.constant 1.07250822 : f32
    %3 = vector.broadcast %cst_3 : f32 to vector<8x8xf32>
    %4 = arith.mulf %2, %3 : vector<8x8xf32>
    %5 = vector.shape_cast %4 : vector<8x8xf32> to vector<1x8x8xf32>
    %cst_4 = arith.constant dense<0xFF800000> : vector<1xf32>
    %6 = vector.multi_reduction <maximumf>, %5, %cst_4 [1, 2] : vector<1x8x8xf32> to vector<1xf32>
    %7 = vector.shape_cast %6 : vector<1xf32> to vector<1x1x1xf32>
    %8 = vector.extract %7[0, 0, 0] : f32 from vector<1x1x1xf32>
    %9 = vector.broadcast %8 : f32 to vector<8x8xf32>
    %10 = arith.subf %4, %9 : vector<8x8xf32>
    %11 = math.exp %10 : vector<8x8xf32>
    %cst_5 = arith.constant dense<0.000000e+00> : vector<8xf32>
    %12 = vector.multi_reduction <add>, %11, %cst_5 [1] : vector<8x8xf32> to vector<8xf32>
    %13 = vector.shape_cast %12 : vector<8xf32> to vector<8x1xf32>
    %14 = math.log %13 : vector<8x1xf32>
    %15 = vector.broadcast %8 : f32 to vector<8x1xf32>
    %16 = arith.addf %15, %14 : vector<8x1xf32>
    %c0_6 = arith.constant 0 : index
    %c0_7 = arith.constant 0 : index
    %c0_8 = arith.constant 0 : index
    %17 = vector.load %arg4[%c0_6, %c0_7, %c0_8] : memref<1x8x1xf32, #tpu.memory_space<vmem>>, vector<1x8x1xf32>
    %18 = vector.shape_cast %17 : vector<1x8x1xf32> to vector<8x1xf32>
    %19 = vector.shape_cast %16 : vector<8x1xf32> to vector<1x8x1xf32>
    tpu.vector_store %arg4[%c0_6, %c0_7, %c0_8], %19 {strides = array<i32>} : memref<1x8x1xf32, #tpu.memory_space<vmem>>, vector<1x8x1xf32>,
    %cst_9 = arith.constant dense<0.000000e+00> : vector<8xf32>
    %20 = vector.multi_reduction <add>, %11, %cst_9 [0] : vector<8x8xf32> to vector<8xf32>
    %21 = vector.shape_cast %20 : vector<8xf32> to vector<1x8xf32>
    %22 = math.log %21 : vector<1x8xf32>
    %23 = vector.broadcast %8 : f32 to vector<1x8xf32>
    %24 = arith.addf %23, %22 : vector<1x8xf32>
    %c0_10 = arith.constant 0 : index
    %c0_11 = arith.constant 0 : index
    %c0_12 = arith.constant 0 : index
    %25 = vector.load %arg5[%c0_10, %c0_11, %c0_12] : memref<1x1x8xf32, #tpu.memory_space<vmem>>, vector<1x1x8xf32>
    %26 = vector.shape_cast %25 : vector<1x1x8xf32> to vector<1x8xf32>
    %27 = vector.shape_cast %24 : vector<1x8xf32> to vector<1x1x8xf32>
    tpu.vector_store %arg5[%c0_10, %c0_11, %c0_12], %27 {strides = array<i32>} : memref<1x1x8xf32, #tpu.memory_space<vmem>>, vector<1x1x8xf32>,
    %28 = arith.cmpi eq, %arg1, %arg0 : i32
    %29 = arith.extui %28 : i1 to i32
    %c0_i32 = arith.constant 0 : i32
    %30 = arith.cmpi ne, %29, %c0_i32 : i32
    scf.if %30 {
      %31 = arith.mulf %0, %1 : vector<8x128xf32>
      %cst_13 = arith.constant dense<0.000000e+00> : vector<8xf32>
      %32 = vector.multi_reduction <add>, %31, %cst_13 [1] : vector<8x128xf32> to vector<8xf32>
      %33 = vector.shape_cast %32 : vector<8xf32> to vector<8x1xf32>
      %cst_14 = arith.constant 1.07250822 : f32
      %34 = vector.broadcast %cst_14 : f32 to vector<8x1xf32>
      %35 = arith.mulf %34, %33 : vector<8x1xf32>
      %c0_15 = arith.constant 0 : index
      %c0_16 = arith.constant 0 : index
      %36 = vector.load %arg6[%c0_15, %c0_16] : memref<8x1xf32, #tpu.memory_space<vmem>>, vector<8x1xf32>
      tpu.vector_store %arg6[%c0_15, %c0_16], %35 {strides = array<i32>} : memref<8x1xf32, #tpu.memory_space<vmem>>, vector<8x1xf32>,
    } else {
    }
    return
  }
  func.func @transform_0(%arg0: i32, %arg1: i32) -> (i32, i32) {
    %c0_i32 = arith.constant 0 : i32
    %c0_i32_0 = arith.constant 0 : i32
    return %arg0, %c0_i32 : i32, i32
  }
  func.func @transform_1(%arg0: i32, %arg1: i32) -> (i32, i32) {
    %c0_i32 = arith.constant 0 : i32
    %c0_i32_0 = arith.constant 0 : i32
    return %arg1, %c0_i32 : i32, i32
  }
  func.func @transform_2(%arg0: i32, %arg1: i32) -> (i32, i32, i32) {
    %c0_i32 = arith.constant 0 : i32
    %c0_i32_0 = arith.constant 0 : i32
    return %arg1, %arg0, %c0_i32 : i32, i32, i32
  }
  func.func @transform_3(%arg0: i32, %arg1: i32) -> (i32, i32, i32) {
    %c0_i32 = arith.constant 0 : i32
    %c0_i32_0 = arith.constant 0 : i32
    return %arg0, %c0_i32, %arg1 : i32, i32, i32
  }
  func.func @transform_4(%arg0: i32, %arg1: i32) -> (i32, i32) {
    %c0_i32 = arith.constant 0 : i32
    %c0_i32_0 = arith.constant 0 : i32
    return %arg0, %c0_i32 : i32, i32
  }
}

</mosaic_0001>

<llo_original>
// kernel: contrast_loss.1
$region0: #{contrast_loss.1}
  #allocation0 [shape = 'u32[]', space=smem, size = 0x4, offset = 0x4, fixed_abs, tag = 'smem constant byte address 0x4 - core index']
  #allocation1 [shape = 'u32[144,128]{1,0:T(1,128)}', space=vmem, size = 0x12000, scoped, tag = 'internal scratch']
  %s0 = inlined_call_operand.vmem [shape: f32[8,128], index: 0, kind: input, shape index: {}]
  %s1 = inlined_call_operand.vmem [shape: f32[8,128], index: 1, kind: input, shape index: {}]
  %s2 = inlined_call_operand.vmem [shape: f32[1,8,1], index: 2, kind: output, shape index: {0}]
  %s3 = inlined_call_operand.vmem [shape: f32[1,1,8], index: 3, kind: output, shape index: {1}]
  %s4 = inlined_call_operand.vmem [shape: f32[8,1], index: 4, kind: output, shape index: {2}]
  %5 = xla_tuple %s2, %s3, %s4
  %s6 = sld [smem:[#allocation0]]
  $region38: #{contrast_loss.1} parent=0
    _
  %s8 = ssub.s32 1, %s6
  %s9 = scalar_select 0, %s8, %s6
  // Predicated region
  $region2: #{contrast_loss.1} parent=0 // pred_check
    _
  $region3: #{contrast_loss.1} parent=0 // pred_check_branch
    %11 = sbr.rel (0) target = $region5
  $region4: #{contrast_loss.1} parent=0 // pred_region
    _
  $region5: #{contrast_loss.1} parent=0 // pred_fallthru
    _
  // Predicated region
  $region6: #{contrast_loss.1} parent=0 // pred_check
    _
  $region7: #{contrast_loss.1} parent=0 // pred_check_branch
    %13 = sbr.rel (0) target = $region9
  $region8: #{contrast_loss.1} parent=0 // pred_region
    _
  $region9: #{contrast_loss.1} parent=0 // pred_fallthru
    _
  %v14 = vld [vmem:[%s0] sm:$0xff]
  %v15 = vld [vmem:[%s1] sm:$0xff]
  %16 = vmatprep.subr.mxu0 0.0
  %17 = vmatpush1.xpose.msra.mxu0 %v15
  %18 = vmatprep.subr.mxu0 0.0
  %19 = vmatpush1.xpose.msra.mxu0 0.0
  %20 = vmatprep.subr.mxu0 0.0
  %21 = vmatpush1.xpose.msra.mxu0 0.0
  %22 = vmatprep.subr.mxu0 0.0
  %23 = vmatpush1.xpose.msra.mxu0 0.0
  %24 = vmatprep.subr.mxu0 0.0
  %25 = vmatpush1.xpose.msra.mxu0 0.0
  %26 = vmatprep.subr.mxu0 0.0
  %27 = vmatpush1.xpose.msra.mxu0 0.0
  %28 = vmatprep.subr.mxu0 0.0
  %29 = vmatpush1.xpose.msra.mxu0 0.0
  %30 = vmatprep.subr.mxu0 0.0
  %31 = vmatpush1.xpose.msra.mxu0 0.0
  %32 = vmatprep.subr.mxu0 0.0
  %33 = vmatpush1.xpose.msra.mxu0 0.0
  %34 = vmatprep.subr.mxu0 0.0
  %35 = vmatpush1.xpose.msra.mxu0 0.0
  %36 = vmatprep.subr.mxu0 0.0
  %37 = vmatpush1.xpose.msra.mxu0 0.0
  %38 = vmatprep.subr.mxu0 0.0
  %39 = vmatpush1.xpose.msra.mxu0 0.0
  %40 = vmatprep.subr.mxu0 0.0
  %41 = vmatpush1.xpose.msra.mxu0 0.0
  %42 = vmatprep.subr.mxu0 0.0
  %43 = vmatpush1.xpose.msra.mxu0 0.0
  %44 = vmatprep.subr.mxu0 0.0
  %45 = vmatpush1.xpose.msra.mxu0 0.0
  %46 = vmatprep.subr.mxu0 0.0
  %47 = vmatpush1.xpose.msra.mxu0 0.0
  %48 = vmatprep.subr.mxu0 0.0
  %49 = vmatpush1.xpose.msra.mxu0 0.0
  %50 = vmatprep.subr.mxu0 0.0
  %51 = vmatpush1.xpose.msra.mxu0 0.0
  %52 = vmatprep.subr.mxu0 0.0
  %53 = vmatpush1.xpose.msra.mxu0 0.0
  %54 = vmatprep.subr.mxu0 0.0
  %55 = vmatpush1.xpose.msra.mxu0 0.0
  %56 = vmatprep.subr.mxu0 0.0
  %57 = vmatpush1.xpose.msra.mxu0 0.0
  %58 = vmatprep.subr.mxu0 0.0
  %59 = vmatpush1.xpose.msra.mxu0 0.0
  %60 = vmatprep.subr.mxu0 0.0
  %61 = vmatpush1.xpose.msra.mxu0 0.0
  %62 = vmatprep.subr.mxu0 0.0
  %63 = vmatpush1.xpose.msra.mxu0 0.0
  %64 = vmatprep.subr.mxu0 0.0
  %65 = vmatpush1.xpose.msra.mxu0 0.0
  %66 = vmatprep.subr.mxu0 0.0
  %67 = vmatpush1.xpose.msra.mxu0 0.0
  %68 = vmatprep.subr.mxu0 0.0
  %69 = vmatpush1.xpose.msra.mxu0 0.0
  %70 = vmatprep.subr.mxu0 0.0
  %71 = vmatpush1.xpose.msra.mxu0 0.0
  %72 = vmatprep.subr.mxu0 0.0
  %73 = vmatpush1.xpose.msra.mxu0 0.0
  %74 = vmatprep.subr.mxu0 0.0
  %75 = vmatpush1.xpose.msra.mxu0 0.0
  %76 = vmatprep.subr.mxu0 0.0
  %77 = vmatpush1.xpose.msra.mxu0 0.0
  %78 = vmatprep.subr.mxu0 0.0
  %79 = vmatpush1.xpose.msra.mxu0 0.0
  %80 = vmatprep.mubr.f32.mxu0 0.0
  %81 = vmatmul.mubr.f32.gmra.mrb[0].mxu0 %v14
  %v82 = vpop.f32.mrb[0].mxu0
  %v83 = vadd.f32 0.0, %v82
  %v84 = vpop.f32.mrb[0].mxu0
  %85 = vdwg.mxu0
  %v86 = vmul.f32 %v83, 1.0725082
  %vm87 = vcmask 64512
  %v88 = vsel %vm87, %v86, -inf
  %89 = vmax.xlane.f32.xlu0 %v88
  %v90 = vpop.xlane.xlu0 %89
  %v91 = vrot.slane %v90, 4
  %v92 = vmax.f32 %v90, %v91
  %v93 = vrot.slane %v92, 2
  %v94 = vmax.f32 %v92, %v93
  %v95 = vrot.slane %v94, 1
  %v96 = vmax.f32 %v94, %v95
  %s97 = vtos %v96
  %v98 = vstv %s97
  %v99 = vsub.f32 %v86, %v98
  %v100 = vmul.f32 %v99, 1.442695
  %v101 = vpow.pop %v100
  %v102 = vsel %vm87, %v101, 0.0
  %103 = vadd.xlane.f32.xlu0 %v102
  %v104 = vpop.xlane.xlu0 %103
  %v105 = vlog2.pop %v104
  %v106 = vmul.f32 %v105, 0.6931472
  %v107 = vadd.f32 %v98, %v106
  %vm108 = vcmask 7168
  %109 = vst.msk [vmem:[%s2] sm:$0xff] %vm108, %v107
  %v110 = vrot.slane %v102, 4
  %v111 = vadd.f32 %v102, %v110
  %v112 = vrot.slane %v111, 2
  %v113 = vadd.f32 %v111, %v112
  %v114 = vrot.slane %v113, 1
  %v115 = vadd.f32 %v113, %v114
  %v116 = vlog2.pop %v115
  %v117 = vmul.f32 %v116, 0.6931472
  %v118 = vadd.f32 %v98, %v117
  %vm119 = vcmask 57344
  %120 = vst.msk [vmem:[%s3] sm:$0x1] %vm119, %v118
  %p121 = scmp.eq.s32.totalorder 0, 0
  // Predicated region
  $region10: #{contrast_loss.1} parent=0 // pred_check
    %p122 = pneg %p121
  $region11: #{contrast_loss.1} parent=0 // pred_check_branch
    %124 = sbr.rel (%p122) target = $region13
  $region12: #{contrast_loss.1} parent=0 // pred_region
    %v125 = vmul.f32 %v14, %v15
    %126 = vadd.xlane.f32.xlu0 %v125
    %v127 = vpop.xlane.xlu0 %126
    %v128 = vmul.f32 %v127, 1.0725082
    %129 = vst.msk [vmem:[%s4] sm:$0xff] %vm108, %v128
  $region13: #{contrast_loss.1} parent=0 // pred_fallthru
    _
  // Predicated region
  $region14: #{contrast_loss.1} parent=0 // pred_check
    _
  $region15: #{contrast_loss.1} parent=0 // pred_check_branch
    %131 = sbr.rel (0) target = $region17
  $region16: #{contrast_loss.1} parent=0 // pred_region
    _
  $region17: #{contrast_loss.1} parent=0 // pred_fallthru
    _
  // Predicated region
  $region18: #{contrast_loss.1} parent=0 // pred_check
    _
  $region19: #{contrast_loss.1} parent=0 // pred_check_branch
    %133 = sbr.rel (0) target = $region21
  $region20: #{contrast_loss.1} parent=0 // pred_region
    _
  $region21: #{contrast_loss.1} parent=0 // pred_fallthru
    _
  // Predicated region
  $region22: #{contrast_loss.1} parent=0 // pred_check
    _
  $region23: #{contrast_loss.1} parent=0 // pred_check_branch
    %135 = sbr.rel (0) target = $region25
  $region24: #{contrast_loss.1} parent=0 // pred_region
    _
  $region25: #{contrast_loss.1} parent=0 // pred_fallthru
    _
  // Predicated region
  $region26: #{contrast_loss.1} parent=0 // pred_check
    _
  $region27: #{contrast_loss.1} parent=0 // pred_check_branch
    %137 = sbr.rel (0) target = $region29
  $region28: #{contrast_loss.1} parent=0 // pred_region
    _
  $region29: #{contrast_loss.1} parent=0 // pred_fallthru
    _
  // Predicated region
  $region30: #{contrast_loss.1} parent=0 // pred_check
    _
  $region31: #{contrast_loss.1} parent=0 // pred_check_branch
    %139 = sbr.rel (0) target = $region33
  $region32: #{contrast_loss.1} parent=0 // pred_region
    _
  $region33: #{contrast_loss.1} parent=0 // pred_fallthru
    _
  // Predicated region
  $region34: #{contrast_loss.1} parent=0 // pred_check
    _
  $region35: #{contrast_loss.1} parent=0 // pred_check_branch
    %141 = sbr.rel (0) target = $region37
  $region36: #{contrast_loss.1} parent=0 // pred_region
    _
  $region37: #{contrast_loss.1} parent=0 // pred_fallthru
    _

</llo_original>
